<compile_context>
chip_gen: v7x
topology: tpu7x:2x2x1
jax: 0.10.0
libtpu: 0.0.40
codegen_flags: <defaults>
</compile_context>

<pallas_src>
import jax
import jax.numpy as jnp
from jax.experimental import pallas as pl
from jax.experimental.pallas import tpu as pltpu


def _round_up(x, m):
    return (x + m - 1) // m * m


def _pick_nb(batch, cap=8):
    """Largest batch-block NB (<= cap) that divides B while keeping grid >= 2."""
    if batch <= 1:
        return 1
    best = 1
    for nb in range(1, min(batch, cap) + 1):
        if batch % nb == 0 and batch // nb >= 2:
            best = nb
    return best


def input_embedding_kernel(rows_ref, w_ref, cls_add_ref, patch_add_ref, o_ref):
    # rows_ref:      (NB, S, K)  bf16  patch rows; row 0 per batch = class slot
    # w_ref:         (K,  D)     bf16  transposed projection weight (resident)
    # cls_add_ref:   (B,  1, D)  f32   class_token[b] + pos[b]      (resident)
    # patch_add_ref: (B,  1, D)  f32   bias + pos[b]                (resident)
    # o_ref:         (NB, SV, D)       exact-size output tile, SV = N + 1
    nb, s, k = rows_ref.shape
    sv = o_ref.shape[1]
    d = w_ref.shape[1]

    # One MXU matmul over all NB batches: (NB*S, K) @ (K, D), f32 accumulation.
    flat = rows_ref[...].reshape(nb * s, k)
    proj = jnp.dot(flat, w_ref[...], preferred_element_type=jnp.float32)
    proj = proj.reshape(nb, s, d)[:, :sv, :]

    # Per-batch additive rows are resident in VMEM; slice this step's batches.
    b0 = pl.multiple_of(pl.program_id(0) * nb, nb)
    patch_add = patch_add_ref[pl.ds(b0, nb)]      # (NB, 1, D)  bias + pos
    cls_add = cls_add_ref[pl.ds(b0, nb)]          # (NB, 1, D)  class_token + pos

    out = proj + patch_add                        # broadcast over rows
    o_ref[...] = out.astype(o_ref.dtype)
    # Row 0 of each batch is the class-token slot: overwrite with cls + pos
    # (its projected value is discarded, so no zero-row invariant is needed).
    o_ref[:, 0:1, :] = cls_add.astype(o_ref.dtype)


def input_embedding(x, weight, bias, class_token, pos_embedding, patch_size,
                    *, out_dtype=None):
    """x: (B, C, H, W). Returns (B, N+1, D) = concat(cls, x_patches @ W.T + b) + pos.

    pos_embedding / class_token are (B, 1, D) (as in the reference module);
    pos broadcasts over the sequence dimension.
    """
    B, C, H, W = x.shape
    p = patch_size
    h, w = H // p, W // p
    N = h * w
    K = C * p * p
    D = weight.shape[0]
    SV = N + 1
    if out_dtype is None:
        out_dtype = x.dtype   # pass bf16 here if the downstream encoder is bf16

    # bf16 BEFORE the rearrange: halves the bytes moved by the relayout pass.
    xb = x.astype(jnp.bfloat16)
    # einops 'b c (h h1) (w w1) -> b (h w) (h1 w1 c)'
    patches = xb.reshape(B, C, h, p, w, p).transpose(0, 2, 4, 3, 5, 1).reshape(B, N, K)

    # One pad: prepend the all-zero class slot row and round rows up to a
    # multiple of 16 (bf16 packs 16 rows per vreg). No K or D padding.
    S = _round_up(SV, 16)
    rows = jnp.pad(patches, ((0, 0), (1, S - 1 - N), (0, 0)))      # (B, S, K) bf16

    wt = weight.T.astype(jnp.bfloat16)                              # (K, D)

    pos = pos_embedding[:, 0, :].astype(jnp.float32)                # (B, D)
    cls_add = (class_token[:, 0, :].astype(jnp.float32) + pos)[:, None, :]   # (B,1,D)
    patch_add = (bias.astype(jnp.float32)[None, :] + pos)[:, None, :]        # (B,1,D)

    NB = _pick_nb(B)
    G = B // NB

    # VMEM budget: double-buffered rows/out blocks + resident weight/adds + slack.
    out_isz = jnp.dtype(out_dtype).itemsize
    vmem_need = (2 * (NB * S * K * 2 + NB * SV * D * out_isz)
                 + 2 * (K * D * 2) + 2 * (2 * B * D * 4) + (4 << 20))
    vmem_limit = int(min(max(vmem_need, 8 << 20), 64 << 20))        # v7x-safe cap

    out = pl.pallas_call(
        input_embedding_kernel,
        out_shape=jax.ShapeDtypeStruct((B, SV, D), out_dtype),
        grid_spec=pltpu.PrefetchScalarGridSpec(
            num_scalar_prefetch=0,
            grid=(G,),
            in_specs=[
                pl.BlockSpec((NB, S, K), lambda g: (g, 0, 0)),
                pl.BlockSpec((K, D), lambda g: (0, 0)),
                pl.BlockSpec((B, 1, D), lambda g: (0, 0, 0)),   # resident, one DMA
                pl.BlockSpec((B, 1, D), lambda g: (0, 0, 0)),   # resident, one DMA
            ],
            out_specs=pl.BlockSpec((NB, SV, D), lambda g: (g, 0, 0)),
        ),
        compiler_params=pltpu.CompilerParams(
            dimension_semantics=("parallel",),
            vmem_limit_bytes=vmem_limit,
            allow_input_fusion=[True, False, False, False],
        ),
    )(rows, wt, cls_add, patch_add)

    return out   # exact (B, N+1, D): no post-kernel slice copy


if __name__ == "__main__":
    # model_config equivalents (small, consistent with the module):
    batch_size = 2
    n_channels = 4
    patch_size = 4
    image_size = 16
    latent_size = 32
    input_size = n_channels * patch_size * patch_size   # K = 64

    key = jax.random.PRNGKey(0)
    k_x, k_w, k_b, k_cls, k_pos = jax.random.split(key, 5)

    x = jax.random.normal(
        k_x, (batch_size, n_channels, image_size, image_size), dtype=jnp.float32)
    # nn.Linear(input_size, latent_size): weight (D, K), bias (D,)
    weight = jax.random.normal(k_w, (latent_size, input_size), jnp.float32) * 0.02
    bias = jax.random.normal(k_b, (latent_size,), jnp.float32) * 0.02
    class_token = jax.random.normal(k_cls, (batch_size, 1, latent_size), jnp.float32)
    pos_embedding = jax.random.normal(k_pos, (batch_size, 1, latent_size), jnp.float32)

    out = input_embedding(x, weight, bias, class_token, pos_embedding, patch_size)
    out = jax.block_until_ready(out)

    # Pure-JAX f32 reference (same semantics as the PyTorch forward).
    B, C, H, W = x.shape
    h_, w_ = H // patch_size, W // patch_size
    ref_patches = x.reshape(B, C, h_, patch_size, w_, patch_size)
    ref_patches = ref_patches.transpose(0, 2, 4, 3, 5, 1).reshape(
        B, h_ * w_, C * patch_size * patch_size)
    ref_proj = ref_patches @ weight.T + bias
    ref = jnp.concatenate([class_token, ref_proj], axis=1) + pos_embedding

    assert out.shape == (batch_size, h_ * w_ + 1, latent_size), out.shape
    # bf16 matmul inputs with f32 accumulation -> ~1e-3 level differences.
    assert jnp.allclose(out, ref, atol=2e-2, rtol=2e-2)
    print("KERNEL_OK")
</pallas_src>

<mosaic_0001>
module attributes {stable_mosaic.version = 11 : i64} {
  func.func @input_embedding_kernel(%arg0: i32, %arg1: memref<1x32x64xbf16, #tpu.memory_space<vmem>>, %arg2: memref<64x32xbf16, #tpu.memory_space<vmem>>, %arg3: memref<2x1x32xf32, #tpu.memory_space<vmem>>, %arg4: memref<2x1x32xf32, #tpu.memory_space<vmem>>, %arg5: memref<1x17x32xf32, #tpu.memory_space<vmem>>) attributes {dimension_semantics = [#tpu.dimension_semantics<parallel>], iteration_bounds = array<i64: 2>, scalar_prefetch = 0 : i64, scratch_operands = 0 : i64, tpu.core_type = #tpu.core_type<tc>, window_params = [{transform_indices = @transform_0, window_bounds = array<i64: 1, 32, 64>}, {pipeline_mode = #tpu.pipeline_mode<synchronous>, transform_indices = @transform_1, window_bounds = array<i64: 64, 32>}, {pipeline_mode = #tpu.pipeline_mode<synchronous>, transform_indices = @transform_2, window_bounds = array<i64: 2, 1, 32>}, {pipeline_mode = #tpu.pipeline_mode<synchronous>, transform_indices = @transform_3, window_bounds = array<i64: 2, 1, 32>}, {transform_indices = @transform_4, window_bounds = array<i64: 1, 17, 32>}]} {
    %c0 = arith.constant 0 : index
    %c0_0 = arith.constant 0 : index
    %c0_1 = arith.constant 0 : index
    %0 = vector.load %arg1[%c0, %c0_0, %c0_1] : memref<1x32x64xbf16, #tpu.memory_space<vmem>>, vector<1x32x64xbf16>
    %1 = vector.shape_cast %0 : vector<1x32x64xbf16> to vector<32x64xbf16>
    %c0_2 = arith.constant 0 : index
    %c0_3 = arith.constant 0 : index
    %2 = vector.load %arg2[%c0_2, %c0_3] : memref<64x32xbf16, #tpu.memory_space<vmem>>, vector<64x32xbf16>
    %cst = arith.constant dense<0.000000e+00> : vector<32x32xf32>
    %3 = tpu.matmul %1, %2, %cst {dimension_numbers = #tpu.dot_dimension_numbers<[1], [0], [0], [1], [0, 0, 1, 1], [], []>} : vector<32x64xbf16>, vector<64x32xbf16>, vector<32x32xf32> -> vector<32x32xf32>
    %4 = vector.shape_cast %3 : vector<32x32xf32> to vector<1x32x32xf32>
    %5 = vector.extract_strided_slice %4 {offsets = [0, 0, 0], sizes = [1, 17, 32], strides = [1, 1, 1]} : vector<1x32x32xf32> to vector<1x17x32xf32>
    %c1_i32 = arith.constant 1 : i32
    %6 = arith.muli %arg0, %c1_i32 : i32
    %7 = tpu.assume_multiple %6, 1 : i32
    %8 = arith.index_cast %7 : i32 to index
    %c0_4 = arith.constant 0 : index
    %c0_5 = arith.constant 0 : index
    %9 = vector.load %arg4[%8, %c0_4, %c0_5] : memref<2x1x32xf32, #tpu.memory_space<vmem>>, vector<1x1x32xf32>
    %10 = arith.index_cast %7 : i32 to index
    %c0_6 = arith.constant 0 : index
    %c0_7 = arith.constant 0 : index
    %11 = vector.load %arg3[%10, %c0_6, %c0_7] : memref<2x1x32xf32, #tpu.memory_space<vmem>>, vector<1x1x32xf32>
    %12 = vector.broadcast %9 : vector<1x1x32xf32> to vector<1x17x32xf32>
    %13 = arith.addf %5, %12 : vector<1x17x32xf32>
    %c0_8 = arith.constant 0 : index
    %c0_9 = arith.constant 0 : index
    %c0_10 = arith.constant 0 : index
    %14 = vector.load %arg5[%c0_8, %c0_9, %c0_10] : memref<1x17x32xf32, #tpu.memory_space<vmem>>, vector<1x17x32xf32>
    tpu.vector_store %arg5[%c0_8, %c0_9, %c0_10], %13 {strides = array<i32>} : memref<1x17x32xf32, #tpu.memory_space<vmem>>, vector<1x17x32xf32>,
    %c0_11 = arith.constant 0 : index
    %c0_12 = arith.constant 0 : index
    %c0_13 = arith.constant 0 : index
    %15 = vector.load %arg5[%c0_11, %c0_12, %c0_13] : memref<1x17x32xf32, #tpu.memory_space<vmem>>, vector<1x1x32xf32>
    tpu.vector_store %arg5[%c0_11, %c0_12, %c0_13], %11 {strides = array<i32>} : memref<1x17x32xf32, #tpu.memory_space<vmem>>, vector<1x1x32xf32>,
    return
  }
  func.func @transform_0(%arg0: i32) -> (i32, i32, i32) {
    %c0_i32 = arith.constant 0 : i32
    %c0_i32_0 = arith.constant 0 : i32
    %c0_i32_1 = arith.constant 0 : i32
    return %arg0, %c0_i32, %c0_i32_0 : i32, i32, i32
  }
  func.func @transform_1(%arg0: i32) -> (i32, i32) {
    %c0_i32 = arith.constant 0 : i32
    %c0_i32_0 = arith.constant 0 : i32
    %c0_i32_1 = arith.constant 0 : i32
    return %c0_i32, %c0_i32_0 : i32, i32
  }
  func.func @transform_2(%arg0: i32) -> (i32, i32, i32) {
    %c0_i32 = arith.constant 0 : i32
    %c0_i32_0 = arith.constant 0 : i32
    %c0_i32_1 = arith.constant 0 : i32
    %c0_i32_2 = arith.constant 0 : i32
    return %c0_i32, %c0_i32_0, %c0_i32_1 : i32, i32, i32
  }
  func.func @transform_3(%arg0: i32) -> (i32, i32, i32) {
    %c0_i32 = arith.constant 0 : i32
    %c0_i32_0 = arith.constant 0 : i32
    %c0_i32_1 = arith.constant 0 : i32
    %c0_i32_2 = arith.constant 0 : i32
    return %c0_i32, %c0_i32_0, %c0_i32_1 : i32, i32, i32
  }
  func.func @transform_4(%arg0: i32) -> (i32, i32, i32) {
    %c0_i32 = arith.constant 0 : i32
    %c0_i32_0 = arith.constant 0 : i32
    %c0_i32_1 = arith.constant 0 : i32
    return %arg0, %c0_i32, %c0_i32_0 : i32, i32, i32
  }
}

</mosaic_0001>

<llo_original>
// kernel: tpu_custom_call.1
$region0: #{tpu_custom_call.1}
  #allocation0 [shape = 'u32[]', space=smem, size = 0x4, offset = 0x4, fixed_abs, tag = 'smem constant byte address 0x4 - core index']
  #allocation1 [shape = 'u32[144,128]{1,0:T(1,128)}', space=vmem, size = 0x12000, scoped, tag = 'internal scratch']
  %s0 = inlined_call_operand.vmem [shape: bf16[2,32,64], index: 0, kind: input, shape index: {}]
  %s1 = inlined_call_operand.vmem [shape: bf16[64,32], index: 1, kind: input, shape index: {}]
  %s2 = inlined_call_operand.vmem [shape: f32[2,1,32], index: 2, kind: input, shape index: {}]
  %s3 = inlined_call_operand.vmem [shape: f32[2,1,32], index: 3, kind: input, shape index: {}]
  %s4 = inlined_call_operand.vmem [shape: f32[2,17,32], index: 4, kind: output, shape index: {}]
  %s5 = sld [smem:[#allocation0]]
  $region49: #{tpu_custom_call.1} parent=0
    _
  %s7 = ssub.s32 1, %s5
  %s8 = scalar_select 0, %s7, %s5
  loop: start=0, step=1, limit=4
  $region2: #{tpu_custom_call.1} parent=0 // loop_pre_header
    _
  $region3: #{tpu_custom_call.1} parent=0 // loop_header
    %s10 = sphi 0, %s14
    %p11 = scmp.ge.s32.totalorder %s10, 4
    %s20 = sphi 0, %s22
    %s23 = sphi 0, %s20
    %s24 = sphi 0, %s23
    %s40 = sphi 0, %s24
    %s44 = sphi 0, %s44
    %s46 = sphi 0, %s44
    %s47 = sphi 0, %s46
    %s61 = sphi 0, %s47
    %s65 = sphi 0, %s65
    %s67 = sphi 0, %s65
    %s68 = sphi 0, %s67
    %s82 = sphi 0, %s68
    %s86 = sphi 0, %s86
    %s88 = sphi 0, %s86
    %s89 = sphi 0, %s88
    %s103 = sphi 0, %s89
    %s109 = sphi 0, %s111
    %s112 = sphi 0, %s109
    %s113 = sphi 0, %s112
    %s129 = sphi 0, %s113
  $region4: #{tpu_custom_call.1} parent=0 // loop_header_branch
    %13 = sbr.rel (%p11) target = $region8
  $region5: #{tpu_custom_call.1} parent=0 // loop_body
    %s15 = ssub.s32 %s10, 1
    %s16 = ssub.s32 %s10, 2
    %s17 = sadd.s32 %s10, 1
    %s18 = ssub.s32 %s10, %s17
    %p19 = scmp.eq.s32.totalorder %s18, 0
    %s21 = sadd.s32 %s20, 1
    %s22 = scalar_select %p19, %s20, %s21
    %p25 = pneg %p19
    %p26 = scmp.eq.s32.totalorder %s10, 1
    %p27 = por %p25, %p26
    %p28 = scmp.ne.s32.totalorder %s20, %s23
    %p29 = scmp.eq.s32.totalorder %s10, 0
    %p30 = por %p28, %p29
    %p31 = scmp.ne.s32.totalorder %s20, %s23
    %p32 = scmp.eq.s32.totalorder %s15, 1
    %p33 = por %p31, %p32
    %p34 = scmp.ne.s32.totalorder %s23, %s24
    %p35 = scmp.eq.s32.totalorder %s15, 0
    %p36 = por %p34, %p35
    %p37 = scmp.ne.s32.totalorder %s23, %s24
    %p38 = scmp.eq.s32.totalorder %s16, 1
    %p39 = por %p37, %p38
    %p41 = scmp.ne.s32.totalorder %s24, %s40
    %p42 = scmp.eq.s32.totalorder %s16, 0
    %p43 = por %p41, %p42
    %s45 = sadd.s32 %s44, 1
    %p48 = scmp.eq.s32.totalorder %s10, 1
    %p49 = scmp.ne.s32.totalorder %s44, %s46
    %p50 = scmp.eq.s32.totalorder %s10, 0
    %p51 = por %p49, %p50
    %p52 = scmp.ne.s32.totalorder %s44, %s46
    %p53 = scmp.eq.s32.totalorder %s15, 1
    %p54 = por %p52, %p53
    %p55 = scmp.ne.s32.totalorder %s46, %s47
    %p56 = scmp.eq.s32.totalorder %s15, 0
    %p57 = por %p55, %p56
    %p58 = scmp.ne.s32.totalorder %s46, %s47
    %p59 = scmp.eq.s32.totalorder %s16, 1
    %p60 = por %p58, %p59
    %p62 = scmp.ne.s32.totalorder %s47, %s61
    %p63 = scmp.eq.s32.totalorder %s16, 0
    %p64 = por %p62, %p63
    %s66 = sadd.s32 %s65, 1
    %p69 = scmp.eq.s32.totalorder %s10, 1
    %p70 = scmp.ne.s32.totalorder %s65, %s67
    %p71 = scmp.eq.s32.totalorder %s10, 0
    %p72 = por %p70, %p71
    %p73 = scmp.ne.s32.totalorder %s65, %s67
    %p74 = scmp.eq.s32.totalorder %s15, 1
    %p75 = por %p73, %p74
    %p76 = scmp.ne.s32.totalorder %s67, %s68
    %p77 = scmp.eq.s32.totalorder %s15, 0
    %p78 = por %p76, %p77
    %p79 = scmp.ne.s32.totalorder %s67, %s68
    %p80 = scmp.eq.s32.totalorder %s16, 1
    %p81 = por %p79, %p80
    %p83 = scmp.ne.s32.totalorder %s68, %s82
    %p84 = scmp.eq.s32.totalorder %s16, 0
    %p85 = por %p83, %p84
    %s87 = sadd.s32 %s86, 1
    %p90 = scmp.eq.s32.totalorder %s10, 1
    %p91 = scmp.ne.s32.totalorder %s86, %s88
    %p92 = scmp.eq.s32.totalorder %s10, 0
    %p93 = por %p91, %p92
    %p94 = scmp.ne.s32.totalorder %s86, %s88
    %p95 = scmp.eq.s32.totalorder %s15, 1
    %p96 = por %p94, %p95
    %p97 = scmp.ne.s32.totalorder %s88, %s89
    %p98 = scmp.eq.s32.totalorder %s15, 0
    %p99 = por %p97, %p98
    %p100 = scmp.ne.s32.totalorder %s88, %s89
    %p101 = scmp.eq.s32.totalorder %s16, 1
    %p102 = por %p100, %p101
    %p104 = scmp.ne.s32.totalorder %s89, %s103
    %p105 = scmp.eq.s32.totalorder %s16, 0
    %p106 = por %p104, %p105
    %s107 = ssub.s32 %s10, %s17
    %p108 = scmp.eq.s32.totalorder %s107, 0
    %s110 = sadd.s32 %s109, 1
    %s111 = scalar_select %p108, %s109, %s110
    %p114 = pneg %p108
    %p115 = scmp.eq.s32.totalorder %s10, 1
    %p116 = por %p114, %p115
    %p117 = scmp.ne.s32.totalorder %s109, %s112
    %p118 = scmp.eq.s32.totalorder %s10, 0
    %p119 = por %p117, %p118
    %p120 = scmp.ne.s32.totalorder %s109, %s112
    %p121 = scmp.eq.s32.totalorder %s15, 1
    %p122 = por %p120, %p121
    %p123 = scmp.ne.s32.totalorder %s112, %s113
    %p124 = scmp.eq.s32.totalorder %s15, 0
    %p125 = por %p123, %p124
    %p126 = scmp.ne.s32.totalorder %s112, %s113
    %p127 = scmp.eq.s32.totalorder %s16, 1
    %p128 = por %p126, %p127
    %p130 = scmp.ne.s32.totalorder %s113, %s129
    %p131 = scmp.eq.s32.totalorder %s16, 0
    %p132 = por %p130, %p131
    %p133 = scmp.le.s32.totalorder 1, %s10
    %p134 = scmp.lt.s32.totalorder %s10, 3
    %p135 = pnand %p133, %p134
    %p136 = pneg %p135
    // Predicated region
    $region9: #{tpu_custom_call.1} parent=5 // pred_check
      _
    $region10: #{tpu_custom_call.1} parent=5 // pred_check_branch
      %138 = sbr.rel (%p135) target = $region12
    $region11: #{tpu_custom_call.1} parent=5 // pred_region
      %s139 = ssub.s32 %s10, 1
      // Predicated region
      $region13: #{tpu_custom_call.1} parent=11 // pred_check
        %p140 = pneg %p57
      $region14: #{tpu_custom_call.1} parent=11 // pred_check_branch
        %142 = sbr.rel (%p140) target = $region16
      $region15: #{tpu_custom_call.1} parent=11 // pred_region
        _
      $region16: #{tpu_custom_call.1} parent=11 // pred_fallthru
        _
      // Predicated region
      $region17: #{tpu_custom_call.1} parent=11 // pred_check
        %p143 = pneg %p78
      $region18: #{tpu_custom_call.1} parent=11 // pred_check_branch
        %145 = sbr.rel (%p143) target = $region20
      $region19: #{tpu_custom_call.1} parent=11 // pred_region
        _
      $region20: #{tpu_custom_call.1} parent=11 // pred_fallthru
        _
      // Predicated region
      $region21: #{tpu_custom_call.1} parent=11 // pred_check
        %p146 = pneg %p99
      $region22: #{tpu_custom_call.1} parent=11 // pred_check_branch
        %148 = sbr.rel (%p146) target = $region24
      $region23: #{tpu_custom_call.1} parent=11 // pred_region
        _
      $region24: #{tpu_custom_call.1} parent=11 // pred_fallthru
        _
    $region12: #{tpu_custom_call.1} parent=5 // pred_fallthru
      _
    %p149 = scmp.lt.s32.totalorder %s10, 2
    // Predicated region
    $region25: #{tpu_custom_call.1} parent=5 // pred_check
      %p150 = pneg %p149
    $region26: #{tpu_custom_call.1} parent=5 // pred_check_branch
      %152 = sbr.rel (%p150) target = $region28
    $region27: #{tpu_custom_call.1} parent=5 // pred_region
      // Predicated region
      $region29: #{tpu_custom_call.1} parent=27 // pred_check
        %p153 = pneg %p30
      $region30: #{tpu_custom_call.1} parent=27 // pred_check_branch
        %155 = sbr.rel (%p153) target = $region32
      $region31: #{tpu_custom_call.1} parent=27 // pred_region
        %p156 = scmp.lt.s32.totalorder %s10, 1
        %s157 = scalar_select %p156, %s10, 1
        %s158 = smul.addr %s157, 4
        %s159 = smul.addr %s158, 4
        %s160 = scalar_lea.vmem %s0, %s159
      $region32: #{tpu_custom_call.1} parent=27 // pred_fallthru
        _
    $region28: #{tpu_custom_call.1} parent=5 // pred_fallthru
      _
    %p161 = scmp.le.s32.totalorder 1, %s10
    %p162 = scmp.lt.s32.totalorder %s10, 3
    %p163 = pnand %p161, %p162
    %p164 = pneg %p163
    // Predicated region
    $region33: #{tpu_custom_call.1} parent=5 // pred_check
      _
    $region34: #{tpu_custom_call.1} parent=5 // pred_check_branch
      %166 = sbr.rel (%p163) target = $region36
    $region35: #{tpu_custom_call.1} parent=5 // pred_region
      %s167 = ssub.s32 %s10, 1
      %p168 = scmp.lt.s32.totalorder %s15, 1
      %s169 = scalar_select %p168, %s15, 1
      %s170 = smul.addr %s169, 4
      %s171 = smul.addr %s170, 4
      %s172 = scalar_lea.vmem %s0, %s171
      %p173 = pneg %p36
      %p174 = pneg %p33
      %p175 = pneg %p57
      %p176 = pneg %p54
      %p177 = pneg %p78
      %p178 = pneg %p75
      %p179 = pneg %p99
      %p180 = pneg %p96
      %p181 = pneg %p125
      %p182 = pneg %p122
      %p183 = scmp.lt.s32.totalorder %s15, 1
      %s184 = scalar_select %p183, %s15, 1
      %s185 = smul.addr %s184, 3
      %s186 = smul.addr %s185, 8
      %s187 = scalar_lea.vmem %s4, %s186
      %p188 = scmp.lt.s32.totalorder %s15, 1
      %s189 = scalar_select %p188, %s15, 1
      %s190 = smul.addr %s189, 4
      %s191 = smul.addr %s190, 4
      %s192 = scalar_lea.vmem %s0, %s191
      %p193 = scmp.lt.s32.totalorder %s15, 1
      %s194 = scalar_select %p193, %s15, 1
      %s195 = smul.addr %s194, 3
      %s196 = smul.addr %s195, 8
      %s197 = scalar_lea.vmem %s4, %s196
      %v199 = vld [vmem:[%s192] sm:$0xf]
      %v200 = vld [vmem:[%s192 + $0x4] sm:$0xf]
      %v201 = vld [vmem:[%s192 + $0x8] sm:$0xf]
      %v202 = vld [vmem:[%s192 + $0xc] sm:$0xf]
      %v203 = vld [vmem:[%s1] sm:$0xf]
      %v204 = vld [vmem:[%s1 + $0x4] sm:$0xf]
      %v205 = vld [vmem:[%s1 + $0x8] sm:$0xf]
      %v206 = vld [vmem:[%s1 + $0xc] sm:$0xf]
      %v207 = vld [vmem:[%s1 + $0x10] sm:$0xf]
      %v208 = vld [vmem:[%s1 + $0x14] sm:$0xf]
      %v209 = vld [vmem:[%s1 + $0x18] sm:$0xf]
      %v210 = vld [vmem:[%s1 + $0x1c] sm:$0xf]
      %v215 = vunpack.c.l.b16 %v199
      %v216 = vunpack.c.l.b16 %v200
      %v217 = vunpack.c.l.b16 %v201
      %v218 = vunpack.c.l.b16 %v202
      %v219 = vpack.c.b16 %v216, %v215
      %v220 = vpack.c.b16 %v218, %v217
      %v229 = vunpack.c.l.b16 %v203
      %v230 = vunpack.c.l.b16 %v204
      %v231 = vunpack.c.l.b16 %v205
      %v232 = vunpack.c.l.b16 %v206
      %v233 = vunpack.c.l.b16 %v207
      %v234 = vunpack.c.l.b16 %v208
      %v235 = vunpack.c.l.b16 %v209
      %v236 = vunpack.c.l.b16 %v210
      %v237 = vpack.c.b16 %v230, %v229
      %v238 = vpack.c.b16 %v232, %v231
      %v239 = vpack.c.b16 %v234, %v233
      %v240 = vpack.c.b16 %v236, %v235
      %vm245 = vcmask 523264
      %v247 = vsel %vm245, %v219, 0
      %v250 = vsel %vm245, %v220, 0
      %252 = vmatprep.subr.bf16.mxu0 0
      %253 = vmatpush1.bf16.msra.mxu0 %v237
      %254 = vmatprep.subr.bf16.mxu0 0
      %255 = vmatpush1.bf16.msra.mxu0 %v238
      %256 = vmatprep.subr.bf16.mxu0 0
      %257 = vmatpush1.bf16.msra.mxu0 %v239
      %258 = vmatprep.subr.bf16.mxu0 0
      %259 = vmatpush1.bf16.msra.mxu0 %v240
      %260 = vmatprep.subr.bf16.mxu0 0
      %261 = vmatpush1.bf16.msra.mxu0 0
      %262 = vmatprep.subr.bf16.mxu0 0
      %263 = vmatpush1.bf16.msra.mxu0 0
      %264 = vmatprep.subr.bf16.mxu0 0
      %265 = vmatpush1.bf16.msra.mxu0 0
      %266 = vmatprep.subr.bf16.mxu0 0
      %267 = vmatpush1.bf16.msra.mxu0 0
      %268 = vmatprep.subr.bf16.mxu0 0
      %269 = vmatpush1.bf16.msra.mxu0 0
      %270 = vmatprep.subr.bf16.mxu0 0
      %271 = vmatpush1.bf16.msra.mxu0 0
      %272 = vmatprep.subr.bf16.mxu0 0
      %273 = vmatpush1.bf16.msra.mxu0 0
      %274 = vmatprep.subr.bf16.mxu0 0
      %275 = vmatpush1.bf16.msra.mxu0 0
      %276 = vmatprep.subr.bf16.mxu0 0
      %277 = vmatpush1.bf16.msra.mxu0 0
      %278 = vmatprep.subr.bf16.mxu0 0
      %279 = vmatpush1.bf16.msra.mxu0 0
      %280 = vmatprep.subr.bf16.mxu0 0
      %281 = vmatpush1.bf16.msra.mxu0 0
      %282 = vmatprep.subr.bf16.mxu0 0
      %283 = vmatpush1.bf16.msra.mxu0 0
      %284 = vmatprep.mubr.bf16.mxu0 0
      %285 = vmatmul.mubr.bf16.gmra.mrb[0].mxu0 %v247
      %v286 = vpop.f32.mrb[0].mxu0
      %v287 = vadd.f32 0.0, %v286
      %v288 = vpop.f32.mrb[0].mxu0
      %v289 = vpop.f32.mrb[0].mxu0
      %v290 = vadd.f32 0.0, %v289
      %v291 = vpop.f32.mrb[0].mxu0
      %292 = vmatprep.mubr.bf16.mxu0 0
      %293 = vmatmul.mubr.bf16.gmra.mrb[0].mxu0 %v250
      %v294 = vpop.f32.mrb[0].mxu0
      %v295 = vadd.f32 0.0, %v294
      %v296 = vpop.f32.mrb[0].mxu0
      %v297 = vpop.f32.mrb[0].mxu0
      %v298 = vpop.f32.mrb[0].mxu0
      %299 = vdwg.mxu0
      %s300 = scalar_lea.vmem %s3, %s15
      %v301 = vld [vmem:[%s300] sm:$0x1]
      %s302 = scalar_lea.vmem %s2, %s15
      %v303 = vld [vmem:[%s302] sm:$0x1]
      %v305 = vlaneseq
      %v306 = vshrl.u32 %v305, 7
      %v307 = vsub.s32 0, %v306
      %v308 = vrot.slane %v301, %v307
      %v310 = vadd.f32 %v287, %v308
      %v311 = vadd.f32 %v290, %v308
      %v312 = vadd.f32 %v295, %v308
      %vm313 = vcmask 261120
      %314 = vst.msk [vmem:[%s197] sm:$0xff] %vm313, %v310
      %315 = vst.msk [vmem:[%s197 + $0x8] sm:$0xff] %vm313, %v311
      %vm316 = vcmask 253952
      %317 = vst.msk [vmem:[%s197 + $0x10] sm:$0x1] %vm316, %v312
      %318 = vst.msk [vmem:[%s197] sm:$0x1] %vm316, %v303
      %p319 = scmp.lt.s32.totalorder %s15, 1
      %s320 = scalar_select %p319, %s15, 1
      %s321 = smul.addr %s320, 3
      %s322 = smul.addr %s321, 8
      %s323 = scalar_lea.vmem %s4, %s322
      // Predicated region
      $region37: #{tpu_custom_call.1} parent=35 // pred_check
        %p324 = pneg %p122
      $region38: #{tpu_custom_call.1} parent=35 // pred_check_branch
        %326 = sbr.rel (%p324) target = $region40
      $region39: #{tpu_custom_call.1} parent=35 // pred_region
        _
      $region40: #{tpu_custom_call.1} parent=35 // pred_fallthru
        _
    $region36: #{tpu_custom_call.1} parent=5 // pred_fallthru
      _
    %p327 = scmp.le.s32.totalorder 2, %s10
    // Predicated region
    $region41: #{tpu_custom_call.1} parent=5 // pred_check
      %p328 = pneg %p327
    $region42: #{tpu_custom_call.1} parent=5 // pred_check_branch
      %330 = sbr.rel (%p328) target = $region44
    $region43: #{tpu_custom_call.1} parent=5 // pred_region
      %s331 = ssub.s32 %s10, 2
      // Predicated region
      $region45: #{tpu_custom_call.1} parent=43 // pred_check
        %p332 = pneg %p128
      $region46: #{tpu_custom_call.1} parent=43 // pred_check_branch
        %334 = sbr.rel (%p332) target = $region48
      $region47: #{tpu_custom_call.1} parent=43 // pred_region
        %p335 = scmp.lt.s32.totalorder %s16, 1
        %s336 = scalar_select %p335, %s16, 1
        %s337 = smul.addr %s336, 3
        %s338 = smul.addr %s337, 8
        %s339 = scalar_lea.vmem %s4, %s338
      $region48: #{tpu_custom_call.1} parent=43 // pred_fallthru
        _
    $region44: #{tpu_custom_call.1} parent=5 // pred_fallthru
      _
  $region6: #{tpu_custom_call.1} parent=0 // loop_footer
    %s14 = sadd.s32 1, %s10
  $region7: #{tpu_custom_call.1} parent=0 // loop_footer_branch
    %9 = sbr.rel target = $region3
  $region8: #{tpu_custom_call.1} parent=0 // loop_exit
    _

</llo_original>
